<compile_context>
chip_gen: v5e
topology: v5e:2x2
jax: 0.10.0
libtpu: 0.0.40
codegen_flags: <defaults>
</compile_context>

<pallas_src>
import functools
import math

import jax
import jax.numpy as jnp
import numpy as np
from jax.experimental import pallas as pl
from jax.experimental.pallas import tpu as pltpu


# ----------------------------------------------------------------------------
# Fast path: VMEM-resident table, one-hot gather on the MXU.
# ----------------------------------------------------------------------------
def onehot_embedding_kernel(ids_ref, tab_ref, o_ref, *, scale):
    """One grid step: gather block_tokens rows via one-hot matmul + scale.

    ids_ref : (block_tokens, 1) int32 ids (padded entries are -1).
    tab_ref : (V, D) table, VMEM-resident (same block every grid step).
    o_ref   : (block_tokens, D) output block.
    """
    bt = o_ref.shape[0]
    V = tab_ref.shape[0]
    ids = ids_ref[...]                                          # (bt, 1)
    iota = jax.lax.broadcasted_iota(jnp.int32, (bt, V), 1)      # lane axis
    onehot = (iota == ids).astype(tab_ref.dtype)                # (bt, V)
    acc = jnp.dot(onehot, tab_ref[...], preferred_element_type=jnp.float32)
    o_ref[...] = (acc * scale).astype(o_ref.dtype)


# ----------------------------------------------------------------------------
# Large-vocab path: table stays in HBM, chunked / double-buffered row gather
# DMAing straight into the output block.
# ----------------------------------------------------------------------------
def gather_embedding_kernel(ids_ref, n_valid_ref, tab_hbm, o_ref, sem,
                            *, block_tokens, chunk, scale):
    """ids_ref     : (n_pad,) int32 ids, scalar-prefetched into SMEM.
    n_valid_ref : (1,) int32 number of non-padded tokens (SMEM).
    tab_hbm     : (V, D) embedding table left in HBM (pl.ANY).
    o_ref       : (block_tokens, D) output block in VMEM -- DMA destination.
    sem         : (2,) DMA semaphores, one per in-flight chunk slot.
    """
    base = pl.program_id(0) * block_tokens
    # Valid (non-padded) rows in this block.
    nb = jnp.clip(n_valid_ref[0] - base, 0, block_tokens)
    num_chunks = block_tokens // chunk  # static

    def chunk_rows(c):
        return jnp.clip(nb - c * chunk, 0, chunk)

    def issue_chunk(c, slot):
        # Reads SMEM ids + pushes descriptors; called BEFORE the wait on the
        # previous chunk so id loads are not stalled by .wait().
        start = c * chunk
        nrows = chunk_rows(c)

        def issue_row(t, carry):
            @pl.when(t < nrows)
            def _():
                row = ids_ref[base + start + t]
                pltpu.make_async_copy(
                    tab_hbm.at[pl.ds(row, 1), :],
                    o_ref.at[pl.ds(start + t, 1), :],
                    sem.at[slot],
                ).start()
            return carry

        jax.lax.fori_loop(0, chunk, issue_row, 0, unroll=8)

    def wait_chunk(c, slot):
        start = c * chunk
        nrows = chunk_rows(c)

        def wait_row(t, carry):
            @pl.when(t < nrows)
            def _():
                # Fabricated src of identical (1, D) shape; dst is the real
                # destination row, so byte accounting on sem[slot] is exact.
                pltpu.make_async_copy(
                    tab_hbm.at[pl.ds(0, 1), :],
                    o_ref.at[pl.ds(start + t, 1), :],
                    sem.at[slot],
                ).wait()
            return carry

        jax.lax.fori_loop(0, chunk, wait_row, 0, unroll=8)

    # Prime chunk 0 into slot 0.
    issue_chunk(0, 0)

    def step(c, carry):
        slot = jax.lax.rem(c, 2)

        # Issue the next chunk into the other slot before waiting.
        @pl.when(c + 1 < num_chunks)
        def _():
            issue_chunk(c + 1, 1 - slot)

        wait_chunk(c, slot)

        # Scale the finished chunk in place while chunk c+1's DMAs fly.
        start = pl.multiple_of(c * chunk, chunk)
        o_ref[pl.ds(start, chunk), :] = o_ref[pl.ds(start, chunk), :] * scale
        return carry

    jax.lax.fori_loop(0, num_chunks, step, 0)


# ----------------------------------------------------------------------------
# Wrapper
# ----------------------------------------------------------------------------
def embeddings_forward(x, table, *, block_tokens=None, chunk=32,
                       force_hbm_gather=False,
                       vmem_table_budget=4 * 1024 * 1024):
    """x: integer token ids of any shape; table: (vocab, d_model).

    Returns x.shape + (d_model,) = table[x] * sqrt(d_model), matching
    Embeddings.forward of the PyTorch module.
    """
    x = jnp.asarray(x)
    table = jnp.asarray(table)
    V, D = table.shape
    lead_shape = x.shape
    N = int(math.prod(lead_shape))
    scale = float(math.sqrt(D))

    table_bytes = V * D * jnp.dtype(table.dtype).itemsize
    use_vmem_table = (not force_hbm_gather) and (table_bytes <= vmem_table_budget)

    if block_tokens is None:
        block_tokens = 128 if use_vmem_table else 256

    num_blocks = max(1, -(-N // block_tokens))
    n_pad = num_blocks * block_tokens

    # OOB policy: clamp valid ids (documented deviation from nn.Embedding).
    ids = jnp.clip(x.reshape(-1).astype(jnp.int32), 0, V - 1)

    if use_vmem_table:
        # Padded slots get id -1 -> all-zero one-hot row -> zero output row.
        ids2d = jnp.pad(ids, (0, n_pad - N), constant_values=-1).reshape(n_pad, 1)
        out_flat = pl.pallas_call(
            functools.partial(onehot_embedding_kernel, scale=scale),
            out_shape=jax.ShapeDtypeStruct((n_pad, D), table.dtype),
            grid=(num_blocks,),
            in_specs=[
                pl.BlockSpec((block_tokens, 1), lambda i: (i, 0)),
                pl.BlockSpec((V, D), lambda i: (0, 0)),  # table stays resident
            ],
            out_specs=pl.BlockSpec((block_tokens, D), lambda i: (i, 0)),
            compiler_params=pltpu.CompilerParams(
                dimension_semantics=("parallel",),
            ),
        )(ids2d, table)
    else:
        chunk = min(chunk, block_tokens)
        if block_tokens % chunk != 0:
            chunk = math.gcd(block_tokens, chunk)
        ids1d = jnp.pad(ids, (0, n_pad - N))          # pad ids never dereferenced
        n_valid = jnp.asarray([N], dtype=jnp.int32)

        kernel = functools.partial(
            gather_embedding_kernel,
            block_tokens=block_tokens, chunk=chunk, scale=scale)

        out_flat = pl.pallas_call(
            kernel,
            out_shape=jax.ShapeDtypeStruct((n_pad, D), table.dtype),
            grid_spec=pltpu.PrefetchScalarGridSpec(
                num_scalar_prefetch=2,                 # ids, n_valid -> SMEM
                grid=(num_blocks,),
                in_specs=[
                    pl.BlockSpec(memory_space=pl.ANY),  # table stays in HBM
                ],
                out_specs=pl.BlockSpec((block_tokens, D),
                                       lambda i, ids_s, nv_s: (i, 0)),
                scratch_shapes=[
                    pltpu.SemaphoreType.DMA((2,)),      # one sem per chunk slot
                ],
            ),
            compiler_params=pltpu.CompilerParams(
                dimension_semantics=("parallel",),      # token blocks independent
            ),
        )(ids1d, n_valid, table)

    return out_flat[:N].reshape(*lead_shape, D)


if __name__ == "__main__":
    # Small shapes consistent with the module: batch=2, seq=8, d_model=128
    # (lane-dense output), vocab=512 (multiple of the MXU tile width).
    B, S = 2, 8
    vocab, d_model = 512, 128

    key = jax.random.PRNGKey(0)
    k_tab, k_ids = jax.random.split(key)

    table = jax.random.normal(k_tab, (vocab, d_model), dtype=jnp.float32)
    x = jax.random.randint(k_ids, (B, S), 0, vocab, dtype=jnp.int32)

    # Reference: plain JAX gather * sqrt(d_model).
    ref = np.asarray(table[x] * jnp.float32(math.sqrt(d_model)))

    # 1) Default: small table -> VMEM-resident one-hot MXU path (padded tail).
    out = jax.block_until_ready(embeddings_forward(x, table))
    np.testing.assert_allclose(np.asarray(out), ref, rtol=1e-5, atol=1e-5)
    assert out.shape == (B, S, d_model) and out.dtype == table.dtype

    # 2) Fast path, multi-step grid (block_tokens=8 -> 2 grid steps).
    out1 = jax.block_until_ready(embeddings_forward(x, table, block_tokens=8))
    np.testing.assert_allclose(np.asarray(out1), ref, rtol=1e-5, atol=1e-5)

    # 3) Forced HBM-gather path, single block with a masked padded tail
    #    (N=16 valid tokens inside a 256-token block).
    out2 = jax.block_until_ready(
        embeddings_forward(x, table, force_hbm_gather=True))
    np.testing.assert_allclose(np.asarray(out2), ref, rtol=1e-6, atol=1e-6)

    # 4) Forced HBM-gather path, multi-block grid + chunked pipelining.
    out3 = jax.block_until_ready(
        embeddings_forward(x, table, force_hbm_gather=True,
                           block_tokens=8, chunk=8))
    np.testing.assert_allclose(np.asarray(out3), ref, rtol=1e-6, atol=1e-6)

    print("KERNEL_OK")
</pallas_src>

<mosaic_0001>
module attributes {stable_mosaic.version = 11 : i64} {
  func.func @onehot_embedding_kernel(%arg0: i32, %arg1: memref<128x1xi32, #tpu.memory_space<vmem>>, %arg2: memref<512x128xf32, #tpu.memory_space<vmem>>, %arg3: memref<128x128xf32, #tpu.memory_space<vmem>>) attributes {dimension_semantics = [#tpu.dimension_semantics<parallel>], iteration_bounds = array<i64: 1>, scalar_prefetch = 0 : i64, scratch_operands = 0 : i64, tpu.core_type = #tpu.core_type<tc>, window_params = [{transform_indices = @transform_0, window_bounds = array<i64: 128, 1>}, {pipeline_mode = #tpu.pipeline_mode<synchronous>, transform_indices = @transform_1, window_bounds = array<i64: 512, 128>}, {transform_indices = @transform_2, window_bounds = array<i64: 128, 128>}]} {
    %c0 = arith.constant 0 : index
    %c0_0 = arith.constant 0 : index
    %0 = vector.load %arg1[%c0, %c0_0] : memref<128x1xi32, #tpu.memory_space<vmem>>, vector<128x1xi32>
    %1 = tpu.iota {dimensions = array<i32: 1>} : vector<128x512xi32>
    %2 = vector.broadcast %0 : vector<128x1xi32> to vector<128x512xi32>
    %3 = arith.cmpi eq, %1, %2 : vector<128x512xi32>
    %4 = arith.extui %3 : vector<128x512xi1> to vector<128x512xi32>
    %5 = arith.sitofp %4 : vector<128x512xi32> to vector<128x512xf32>
    %c0_1 = arith.constant 0 : index
    %c0_2 = arith.constant 0 : index
    %6 = vector.load %arg2[%c0_1, %c0_2] : memref<512x128xf32, #tpu.memory_space<vmem>>, vector<512x128xf32>
    %cst = arith.constant dense<0.000000e+00> : vector<128x128xf32>
    %7 = tpu.matmul %5, %6, %cst {dimension_numbers = #tpu.dot_dimension_numbers<[1], [0], [0], [1], [0, 0, 1, 1], [], []>} : vector<128x512xf32>, vector<512x128xf32>, vector<128x128xf32> -> vector<128x128xf32>
    %cst_3 = arith.constant 11.3137083 : f32
    %8 = vector.broadcast %cst_3 : f32 to vector<128x128xf32>
    %9 = arith.mulf %7, %8 : vector<128x128xf32>
    %c0_4 = arith.constant 0 : index
    %c0_5 = arith.constant 0 : index
    %10 = vector.load %arg3[%c0_4, %c0_5] : memref<128x128xf32, #tpu.memory_space<vmem>>, vector<128x128xf32>
    tpu.vector_store %arg3[%c0_4, %c0_5], %9 {strides = array<i32>} : memref<128x128xf32, #tpu.memory_space<vmem>>, vector<128x128xf32>,
    return
  }
  func.func @transform_0(%arg0: i32) -> (i32, i32) {
    %c0_i32 = arith.constant 0 : i32
    %c0_i32_0 = arith.constant 0 : i32
    return %arg0, %c0_i32 : i32, i32
  }
  func.func @transform_1(%arg0: i32) -> (i32, i32) {
    %c0_i32 = arith.constant 0 : i32
    %c0_i32_0 = arith.constant 0 : i32
    %c0_i32_1 = arith.constant 0 : i32
    return %c0_i32, %c0_i32_0 : i32, i32
  }
  func.func @transform_2(%arg0: i32) -> (i32, i32) {
    %c0_i32 = arith.constant 0 : i32
    %c0_i32_0 = arith.constant 0 : i32
    return %arg0, %c0_i32 : i32, i32
  }
}

</mosaic_0001>

<llo_original>
// kernel: tpu_custom_call.1
$region0: #{tpu_custom_call.1}
  #allocation0 [shape = 'u32[]', space=smem, size = 0x4, offset = 0x4, fixed_abs, tag = 'smem constant byte address 0x4 - core index']
  #allocation1 [shape = 'u32[72,128]{1,0:T(1,128)}', space=vmem, size = 0x9000, scoped, tag = 'internal scratch']
  %s0 = inlined_call_operand.vmem [shape: s32[128,1], index: 0, kind: input, shape index: {}]
  %s1 = inlined_call_operand.hbm [shape: f32[512,128], index: 1, kind: input, shape index: {}]
  %s2 = inlined_call_operand.hbm [shape: f32[128,128], index: 2, kind: output, shape index: {}]
  %s3 = sld [smem:[#allocation0]]
  $region22: #{tpu_custom_call.1} parent=0
    _
  %s5 = ssub.s32 1, %s3
  %s6 = scalar_select 0, %s5, %s3
  $region1: #{tpu_custom_call.1} parent=0
    #allocation2 [shape = 'u8[262144]{0}', space=vmem, size = 0x40000, scoped, tag = 'input window, operand 1, single buffered']
    #allocation3 [shape = 's32[1]{0}', space=sflag, size = 0x4, scoped, tag = 'scoped memory for tpu_custom_call.1']
    #allocation4 [shape = 's32[1]{0}', space=sflag, size = 0x4, scoped, tag = 'scoped memory for tpu_custom_call.1']
    #allocation5 [shape = 'u8[65536]{0}', space=vmem, size = 0x10000, scoped, tag = 'output window, operand 0, single buffered']
    %7 = vsyncpa [#allocation3], 0
    %8 = vsyncpa [#allocation4], 0
    // Predicated region
    $region2: #{tpu_custom_call.1} parent=1 // pred_check
      _
    $region3: #{tpu_custom_call.1} parent=1 // pred_check_branch
      %10 = sbr.rel (0) target = $region5
    $region4: #{tpu_custom_call.1} parent=1 // pred_region
      _
    $region5: #{tpu_custom_call.1} parent=1 // pred_fallthru
      _
    // Predicated region
    $region6: #{tpu_custom_call.1} parent=1 // pred_check
      _
    $region7: #{tpu_custom_call.1} parent=1 // pred_check_branch
      %12 = sbr.rel (0) target = $region9
    $region8: #{tpu_custom_call.1} parent=1 // pred_region
      %14 = vsyncadd [#allocation3], 0
      %s15 = sshll.u32 %s1, 4
      %s16 = int_to_ptr.hbm [resolvable:$true] %s15
      %s17 = sshll.u32 [#allocation2], 4
      %s18 = int_to_ptr.vmem [resolvable:$true] %s17
      %23 = dma.hbm_to_vmem [thread:$0]  %s16, 8192, %s18, [#allocation3], 128, 128, 8
    $region9: #{tpu_custom_call.1} parent=1 // pred_fallthru
      _
    // Predicated region
    $region10: #{tpu_custom_call.1} parent=1 // pred_check
      _
    $region11: #{tpu_custom_call.1} parent=1 // pred_check_branch
      %25 = sbr.rel (0) target = $region13
    $region12: #{tpu_custom_call.1} parent=1 // pred_region
      %27 = dma.done [#allocation3], 8192
    $region13: #{tpu_custom_call.1} parent=1 // pred_fallthru
      _
    %v28 = vld [vmem:[%s0] sm:$0xff]
    %v29 = vld [vmem:[%s0 + $0x8] sm:$0xff]
    %v30 = vld [vmem:[%s0 + $0x10] sm:$0xff]
    %v31 = vld [vmem:[%s0 + $0x18] sm:$0xff]
    %v32 = vld [vmem:[%s0 + $0x20] sm:$0xff]
    %v33 = vld [vmem:[%s0 + $0x28] sm:$0xff]
    %v34 = vld [vmem:[%s0 + $0x30] sm:$0xff]
    %v35 = vld [vmem:[%s0 + $0x38] sm:$0xff]
    %v36 = vld [vmem:[%s0 + $0x40] sm:$0xff]
    %v37 = vld [vmem:[%s0 + $0x48] sm:$0xff]
    %v38 = vld [vmem:[%s0 + $0x50] sm:$0xff]
    %v39 = vld [vmem:[%s0 + $0x58] sm:$0xff]
    %v40 = vld [vmem:[%s0 + $0x60] sm:$0xff]
    %v41 = vld [vmem:[%s0 + $0x68] sm:$0xff]
    %v42 = vld [vmem:[%s0 + $0x70] sm:$0xff]
    %v43 = vld [vmem:[%s0 + $0x78] sm:$0xff]
    %v44 = vlaneseq
    %v45 = vand.u32 %v44, 127
    %v46 = vadd.s32 %v45, 128
    %v47 = vadd.s32 %v45, 256
    %v48 = vadd.s32 %v45, 384
    %49 = vset.pattern.permute.xlu0 0
    %50 = vperm.xlu0 %49, %v28
    %v51 = vpop.permute.xlu0 %50
    %52 = vset.pattern.permute.xlu0 0
    %53 = vperm.xlu0 %52, %v29
    %v54 = vpop.permute.xlu0 %53
    %55 = vset.pattern.permute.xlu0 0
    %56 = vperm.xlu0 %55, %v30
    %v57 = vpop.permute.xlu0 %56
    %58 = vset.pattern.permute.xlu0 0
    %59 = vperm.xlu0 %58, %v31
    %v60 = vpop.permute.xlu0 %59
    %61 = vset.pattern.permute.xlu0 0
    %62 = vperm.xlu0 %61, %v32
    %v63 = vpop.permute.xlu0 %62
    %64 = vset.pattern.permute.xlu0 0
    %65 = vperm.xlu0 %64, %v33
    %v66 = vpop.permute.xlu0 %65
    %67 = vset.pattern.permute.xlu0 0
    %68 = vperm.xlu0 %67, %v34
    %v69 = vpop.permute.xlu0 %68
    %70 = vset.pattern.permute.xlu0 0
    %71 = vperm.xlu0 %70, %v35
    %v72 = vpop.permute.xlu0 %71
    %73 = vset.pattern.permute.xlu0 0
    %74 = vperm.xlu0 %73, %v36
    %v75 = vpop.permute.xlu0 %74
    %76 = vset.pattern.permute.xlu0 0
    %77 = vperm.xlu0 %76, %v37
    %v78 = vpop.permute.xlu0 %77
    %79 = vset.pattern.permute.xlu0 0
    %80 = vperm.xlu0 %79, %v38
    %v81 = vpop.permute.xlu0 %80
    %82 = vset.pattern.permute.xlu0 0
    %83 = vperm.xlu0 %82, %v39
    %v84 = vpop.permute.xlu0 %83
    %85 = vset.pattern.permute.xlu0 0
    %86 = vperm.xlu0 %85, %v40
    %v87 = vpop.permute.xlu0 %86
    %88 = vset.pattern.permute.xlu0 0
    %89 = vperm.xlu0 %88, %v41
    %v90 = vpop.permute.xlu0 %89
    %91 = vset.pattern.permute.xlu0 0
    %92 = vperm.xlu0 %91, %v42
    %v93 = vpop.permute.xlu0 %92
    %94 = vset.pattern.permute.xlu0 0
    %95 = vperm.xlu0 %94, %v43
    %v96 = vpop.permute.xlu0 %95
    %vm97 = vcmp.eq.s32.totalorder %v45, %v51
    %vm98 = vcmp.eq.s32.totalorder %v46, %v51
    %vm99 = vcmp.eq.s32.totalorder %v47, %v51
    %vm100 = vcmp.eq.s32.totalorder %v48, %v51
    %vm101 = vcmp.eq.s32.totalorder %v45, %v54
    %vm102 = vcmp.eq.s32.totalorder %v46, %v54
    %vm103 = vcmp.eq.s32.totalorder %v47, %v54
    %vm104 = vcmp.eq.s32.totalorder %v48, %v54
    %vm105 = vcmp.eq.s32.totalorder %v45, %v57
    %vm106 = vcmp.eq.s32.totalorder %v46, %v57
    %vm107 = vcmp.eq.s32.totalorder %v47, %v57
    %vm108 = vcmp.eq.s32.totalorder %v48, %v57
    %vm109 = vcmp.eq.s32.totalorder %v45, %v60
    %vm110 = vcmp.eq.s32.totalorder %v46, %v60
    %vm111 = vcmp.eq.s32.totalorder %v47, %v60
    %vm112 = vcmp.eq.s32.totalorder %v48, %v60
    %vm113 = vcmp.eq.s32.totalorder %v45, %v63
    %vm114 = vcmp.eq.s32.totalorder %v46, %v63
    %vm115 = vcmp.eq.s32.totalorder %v47, %v63
    %vm116 = vcmp.eq.s32.totalorder %v48, %v63
    %vm117 = vcmp.eq.s32.totalorder %v45, %v66
    %vm118 = vcmp.eq.s32.totalorder %v46, %v66
    %vm119 = vcmp.eq.s32.totalorder %v47, %v66
    %vm120 = vcmp.eq.s32.totalorder %v48, %v66
    %vm121 = vcmp.eq.s32.totalorder %v45, %v69
    %vm122 = vcmp.eq.s32.totalorder %v46, %v69
    %vm123 = vcmp.eq.s32.totalorder %v47, %v69
    %vm124 = vcmp.eq.s32.totalorder %v48, %v69
    %vm125 = vcmp.eq.s32.totalorder %v45, %v72
    %vm126 = vcmp.eq.s32.totalorder %v46, %v72
    %vm127 = vcmp.eq.s32.totalorder %v47, %v72
    %vm128 = vcmp.eq.s32.totalorder %v48, %v72
    %vm129 = vcmp.eq.s32.totalorder %v45, %v75
    %vm130 = vcmp.eq.s32.totalorder %v46, %v75
    %vm131 = vcmp.eq.s32.totalorder %v47, %v75
    %vm132 = vcmp.eq.s32.totalorder %v48, %v75
    %vm133 = vcmp.eq.s32.totalorder %v45, %v78
    %vm134 = vcmp.eq.s32.totalorder %v46, %v78
    %vm135 = vcmp.eq.s32.totalorder %v47, %v78
    %vm136 = vcmp.eq.s32.totalorder %v48, %v78
    %vm137 = vcmp.eq.s32.totalorder %v45, %v81
    %vm138 = vcmp.eq.s32.totalorder %v46, %v81
    %vm139 = vcmp.eq.s32.totalorder %v47, %v81
    %vm140 = vcmp.eq.s32.totalorder %v48, %v81
    %vm141 = vcmp.eq.s32.totalorder %v45, %v84
    %vm142 = vcmp.eq.s32.totalorder %v46, %v84
    %vm143 = vcmp.eq.s32.totalorder %v47, %v84
    %vm144 = vcmp.eq.s32.totalorder %v48, %v84
    %vm145 = vcmp.eq.s32.totalorder %v45, %v87
    %vm146 = vcmp.eq.s32.totalorder %v46, %v87
    %vm147 = vcmp.eq.s32.totalorder %v47, %v87
    %vm148 = vcmp.eq.s32.totalorder %v48, %v87
    %vm149 = vcmp.eq.s32.totalorder %v45, %v90
    %vm150 = vcmp.eq.s32.totalorder %v46, %v90
    %vm151 = vcmp.eq.s32.totalorder %v47, %v90
    %vm152 = vcmp.eq.s32.totalorder %v48, %v90
    %vm153 = vcmp.eq.s32.totalorder %v45, %v93
    %vm154 = vcmp.eq.s32.totalorder %v46, %v93
    %vm155 = vcmp.eq.s32.totalorder %v47, %v93
    %vm156 = vcmp.eq.s32.totalorder %v48, %v93
    %vm157 = vcmp.eq.s32.totalorder %v45, %v96
    %vm158 = vcmp.eq.s32.totalorder %v46, %v96
    %vm159 = vcmp.eq.s32.totalorder %v47, %v96
    %vm160 = vcmp.eq.s32.totalorder %v48, %v96
    %v161 = vsel %vm97, 1, 0
    %v162 = vsel %vm98, 1, 0
    %v163 = vsel %vm99, 1, 0
    %v164 = vsel %vm100, 1, 0
    %v165 = vsel %vm101, 1, 0
    %v166 = vsel %vm102, 1, 0
    %v167 = vsel %vm103, 1, 0
    %v168 = vsel %vm104, 1, 0
    %v169 = vsel %vm105, 1, 0
    %v170 = vsel %vm106, 1, 0
    %v171 = vsel %vm107, 1, 0
    %v172 = vsel %vm108, 1, 0
    %v173 = vsel %vm109, 1, 0
    %v174 = vsel %vm110, 1, 0
    %v175 = vsel %vm111, 1, 0
    %v176 = vsel %vm112, 1, 0
    %v177 = vsel %vm113, 1, 0
    %v178 = vsel %vm114, 1, 0
    %v179 = vsel %vm115, 1, 0
    %v180 = vsel %vm116, 1, 0
    %v181 = vsel %vm117, 1, 0
    %v182 = vsel %vm118, 1, 0
    %v183 = vsel %vm119, 1, 0
    %v184 = vsel %vm120, 1, 0
    %v185 = vsel %vm121, 1, 0
    %v186 = vsel %vm122, 1, 0
    %v187 = vsel %vm123, 1, 0
    %v188 = vsel %vm124, 1, 0
    %v189 = vsel %vm125, 1, 0
    %v190 = vsel %vm126, 1, 0
    %v191 = vsel %vm127, 1, 0
    %v192 = vsel %vm128, 1, 0
    %v193 = vsel %vm129, 1, 0
    %v194 = vsel %vm130, 1, 0
    %v195 = vsel %vm131, 1, 0
    %v196 = vsel %vm132, 1, 0
    %v197 = vsel %vm133, 1, 0
    %v198 = vsel %vm134, 1, 0
    %v199 = vsel %vm135, 1, 0
    %v200 = vsel %vm136, 1, 0
    %v201 = vsel %vm137, 1, 0
    %v202 = vsel %vm138, 1, 0
    %v203 = vsel %vm139, 1, 0
    %v204 = vsel %vm140, 1, 0
    %v205 = vsel %vm141, 1, 0
    %v206 = vsel %vm142, 1, 0
    %v207 = vsel %vm143, 1, 0
    %v208 = vsel %vm144, 1, 0
    %v209 = vsel %vm145, 1, 0
    %v210 = vsel %vm146, 1, 0
    %v211 = vsel %vm147, 1, 0
    %v212 = vsel %vm148, 1, 0
    %v213 = vsel %vm149, 1, 0
    %v214 = vsel %vm150, 1, 0
    %v215 = vsel %vm151, 1, 0
    %v216 = vsel %vm152, 1, 0
    %v217 = vsel %vm153, 1, 0
    %v218 = vsel %vm154, 1, 0
    %v219 = vsel %vm155, 1, 0
    %v220 = vsel %vm156, 1, 0
    %v221 = vsel %vm157, 1, 0
    %v222 = vsel %vm158, 1, 0
    %v223 = vsel %vm159, 1, 0
    %v224 = vsel %vm160, 1, 0
    %v225 = vcvt.s32.f32 %v161
    %v226 = vcvt.s32.f32 %v162
    %v227 = vcvt.s32.f32 %v163
    %v228 = vcvt.s32.f32 %v164
    %v229 = vcvt.s32.f32 %v165
    %v230 = vcvt.s32.f32 %v166
    %v231 = vcvt.s32.f32 %v167
    %v232 = vcvt.s32.f32 %v168
    %v233 = vcvt.s32.f32 %v169
    %v234 = vcvt.s32.f32 %v170
    %v235 = vcvt.s32.f32 %v171
    %v236 = vcvt.s32.f32 %v172
    %v237 = vcvt.s32.f32 %v173
    %v238 = vcvt.s32.f32 %v174
    %v239 = vcvt.s32.f32 %v175
    %v240 = vcvt.s32.f32 %v176
    %v241 = vcvt.s32.f32 %v177
    %v242 = vcvt.s32.f32 %v178
    %v243 = vcvt.s32.f32 %v179
    %v244 = vcvt.s32.f32 %v180
    %v245 = vcvt.s32.f32 %v181
    %v246 = vcvt.s32.f32 %v182
    %v247 = vcvt.s32.f32 %v183
    %v248 = vcvt.s32.f32 %v184
    %v249 = vcvt.s32.f32 %v185
    %v250 = vcvt.s32.f32 %v186
    %v251 = vcvt.s32.f32 %v187
    %v252 = vcvt.s32.f32 %v188
    %v253 = vcvt.s32.f32 %v189
    %v254 = vcvt.s32.f32 %v190
    %v255 = vcvt.s32.f32 %v191
    %v256 = vcvt.s32.f32 %v192
    %v257 = vcvt.s32.f32 %v193
    %v258 = vcvt.s32.f32 %v194
    %v259 = vcvt.s32.f32 %v195
    %v260 = vcvt.s32.f32 %v196
    %v261 = vcvt.s32.f32 %v197
    %v262 = vcvt.s32.f32 %v198
    %v263 = vcvt.s32.f32 %v199
    %v264 = vcvt.s32.f32 %v200
    %v265 = vcvt.s32.f32 %v201
    %v266 = vcvt.s32.f32 %v202
    %v267 = vcvt.s32.f32 %v203
    %v268 = vcvt.s32.f32 %v204
    %v269 = vcvt.s32.f32 %v205
    %v270 = vcvt.s32.f32 %v206
    %v271 = vcvt.s32.f32 %v207
    %v272 = vcvt.s32.f32 %v208
    %v273 = vcvt.s32.f32 %v209
    %v274 = vcvt.s32.f32 %v210
    %v275 = vcvt.s32.f32 %v211
    %v276 = vcvt.s32.f32 %v212
    %v277 = vcvt.s32.f32 %v213
    %v278 = vcvt.s32.f32 %v214
    %v279 = vcvt.s32.f32 %v215
    %v280 = vcvt.s32.f32 %v216
    %v281 = vcvt.s32.f32 %v217
    %v282 = vcvt.s32.f32 %v218
    %v283 = vcvt.s32.f32 %v219
    %v284 = vcvt.s32.f32 %v220
    %v285 = vcvt.s32.f32 %v221
    %v286 = vcvt.s32.f32 %v222
    %v287 = vcvt.s32.f32 %v223
    %v288 = vcvt.s32.f32 %v224
    %v289 = vld [vmem:[#allocation2] sm:$0xff]
    %v290 = vld [vmem:[#allocation2 + $0x8] sm:$0xff]
    %v291 = vld [vmem:[#allocation2 + $0x10] sm:$0xff]
    %v292 = vld [vmem:[#allocation2 + $0x18] sm:$0xff]
    %v293 = vld [vmem:[#allocation2 + $0x20] sm:$0xff]
    %v294 = vld [vmem:[#allocation2 + $0x28] sm:$0xff]
    %v295 = vld [vmem:[#allocation2 + $0x30] sm:$0xff]
    %v296 = vld [vmem:[#allocation2 + $0x38] sm:$0xff]
    %v297 = vld [vmem:[#allocation2 + $0x40] sm:$0xff]
    %v298 = vld [vmem:[#allocation2 + $0x48] sm:$0xff]
    %v299 = vld [vmem:[#allocation2 + $0x50] sm:$0xff]
    %v300 = vld [vmem:[#allocation2 + $0x58] sm:$0xff]
    %v301 = vld [vmem:[#allocation2 + $0x60] sm:$0xff]
    %v302 = vld [vmem:[#allocation2 + $0x68] sm:$0xff]
    %v303 = vld [vmem:[#allocation2 + $0x70] sm:$0xff]
    %v304 = vld [vmem:[#allocation2 + $0x78] sm:$0xff]
    %v305 = vld [vmem:[#allocation2 + $0x80] sm:$0xff]
    %v306 = vld [vmem:[#allocation2 + $0x88] sm:$0xff]
    %v307 = vld [vmem:[#allocation2 + $0x90] sm:$0xff]
    %v308 = vld [vmem:[#allocation2 + $0x98] sm:$0xff]
    %v309 = vld [vmem:[#allocation2 + $0xa0] sm:$0xff]
    %v310 = vld [vmem:[#allocation2 + $0xa8] sm:$0xff]
    %v311 = vld [vmem:[#allocation2 + $0xb0] sm:$0xff]
    %v312 = vld [vmem:[#allocation2 + $0xb8] sm:$0xff]
    %v313 = vld [vmem:[#allocation2 + $0xc0] sm:$0xff]
    %v314 = vld [vmem:[#allocation2 + $0xc8] sm:$0xff]
    %v315 = vld [vmem:[#allocation2 + $0xd0] sm:$0xff]
    %v316 = vld [vmem:[#allocation2 + $0xd8] sm:$0xff]
    %v317 = vld [vmem:[#allocation2 + $0xe0] sm:$0xff]
    %v318 = vld [vmem:[#allocation2 + $0xe8] sm:$0xff]
    %v319 = vld [vmem:[#allocation2 + $0xf0] sm:$0xff]
    %v320 = vld [vmem:[#allocation2 + $0xf8] sm:$0xff]
    %v321 = vld [vmem:[#allocation2 + $0x100] sm:$0xff]
    %v322 = vld [vmem:[#allocation2 + $0x108] sm:$0xff]
    %v323 = vld [vmem:[#allocation2 + $0x110] sm:$0xff]
    %v324 = vld [vmem:[#allocation2 + $0x118] sm:$0xff]
    %v325 = vld [vmem:[#allocation2 + $0x120] sm:$0xff]
    %v326 = vld [vmem:[#allocation2 + $0x128] sm:$0xff]
    %v327 = vld [vmem:[#allocation2 + $0x130] sm:$0xff]
    %v328 = vld [vmem:[#allocation2 + $0x138] sm:$0xff]
    %v329 = vld [vmem:[#allocation2 + $0x140] sm:$0xff]
    %v330 = vld [vmem:[#allocation2 + $0x148] sm:$0xff]
    %v331 = vld [vmem:[#allocation2 + $0x150] sm:$0xff]
    %v332 = vld [vmem:[#allocation2 + $0x158] sm:$0xff]
    %v333 = vld [vmem:[#allocation2 + $0x160] sm:$0xff]
    %v334 = vld [vmem:[#allocation2 + $0x168] sm:$0xff]
    %v335 = vld [vmem:[#allocation2 + $0x170] sm:$0xff]
    %v336 = vld [vmem:[#allocation2 + $0x178] sm:$0xff]
    %v337 = vld [vmem:[#allocation2 + $0x180] sm:$0xff]
    %v338 = vld [vmem:[#allocation2 + $0x188] sm:$0xff]
    %v339 = vld [vmem:[#allocation2 + $0x190] sm:$0xff]
    %v340 = vld [vmem:[#allocation2 + $0x198] sm:$0xff]
    %v341 = vld [vmem:[#allocation2 + $0x1a0] sm:$0xff]
    %v342 = vld [vmem:[#allocation2 + $0x1a8] sm:$0xff]
    %v343 = vld [vmem:[#allocation2 + $0x1b0] sm:$0xff]
    %v344 = vld [vmem:[#allocation2 + $0x1b8] sm:$0xff]
    %v345 = vld [vmem:[#allocation2 + $0x1c0] sm:$0xff]
    %v346 = vld [vmem:[#allocation2 + $0x1c8] sm:$0xff]
    %v347 = vld [vmem:[#allocation2 + $0x1d0] sm:$0xff]
    %v348 = vld [vmem:[#allocation2 + $0x1d8] sm:$0xff]
    %v349 = vld [vmem:[#allocation2 + $0x1e0] sm:$0xff]
    %v350 = vld [vmem:[#allocation2 + $0x1e8] sm:$0xff]
    %v351 = vld [vmem:[#allocation2 + $0x1f0] sm:$0xff]
    %v352 = vld [vmem:[#allocation2 + $0x1f8] sm:$0xff]
    %353 = vmatpush.msra.mxu0 %v304
    %354 = vmatpush.msra.mxu0 %v303
    %355 = vmatpush.msra.mxu0 %v302
    %356 = vmatpush.msra.mxu0 %v301
    %357 = vmatpush.msra.mxu0 %v300
    %358 = vmatpush.msra.mxu0 %v299
    %359 = vmatpush.msra.mxu0 %v298
    %360 = vmatpush.msra.mxu0 %v297
    %361 = vmatpush.msra.mxu0 %v296
    %362 = vmatpush.msra.mxu0 %v295
    %363 = vmatpush.msra.mxu0 %v294
    %364 = vmatpush.msra.mxu0 %v293
    %365 = vmatpush.msra.mxu0 %v292
    %366 = vmatpush.msra.mxu0 %v291
    %367 = vmatpush.msra.mxu0 %v290
    %368 = vmatpush.msra.mxu0 %v289
    %369 = vmatmul.f32.gmra.mxu0 %v225
    %v370 = vpop.f32.mrf.mxu0
    %v371 = vadd.f32 0.0, %v370
    %372 = vmatmul.f32.gmra.mxu0 %v229
    %v373 = vpop.f32.mrf.mxu0
    %v374 = vadd.f32 0.0, %v373
    %375 = vmatmul.f32.gmra.mxu0 %v233
    %v376 = vpop.f32.mrf.mxu0
    %v377 = vadd.f32 0.0, %v376
    %378 = vmatmul.f32.gmra.mxu0 %v237
    %v379 = vpop.f32.mrf.mxu0
    %v380 = vadd.f32 0.0, %v379
    %381 = vmatmul.f32.gmra.mxu0 %v241
    %v382 = vpop.f32.mrf.mxu0
    %v383 = vadd.f32 0.0, %v382
    %384 = vmatmul.f32.gmra.mxu0 %v245
    %v385 = vpop.f32.mrf.mxu0
    %v386 = vadd.f32 0.0, %v385
    %387 = vmatmul.f32.gmra.mxu0 %v249
    %v388 = vpop.f32.mrf.mxu0
    %v389 = vadd.f32 0.0, %v388
    %390 = vmatmul.f32.gmra.mxu0 %v253
    %v391 = vpop.f32.mrf.mxu0
    %v392 = vadd.f32 0.0, %v391
    %393 = vmatmul.f32.gmra.mxu0 %v257
    %v394 = vpop.f32.mrf.mxu0
    %v395 = vadd.f32 0.0, %v394
    %396 = vmatmul.f32.gmra.mxu0 %v261
    %v397 = vpop.f32.mrf.mxu0
    %v398 = vadd.f32 0.0, %v397
    %399 = vmatmul.f32.gmra.mxu0 %v265
    %v400 = vpop.f32.mrf.mxu0
    %v401 = vadd.f32 0.0, %v400
    %402 = vmatmul.f32.gmra.mxu0 %v269
    %v403 = vpop.f32.mrf.mxu0
    %v404 = vadd.f32 0.0, %v403
    %405 = vmatmul.f32.gmra.mxu0 %v273
    %v406 = vpop.f32.mrf.mxu0
    %v407 = vadd.f32 0.0, %v406
    %408 = vmatmul.f32.gmra.mxu0 %v277
    %v409 = vpop.f32.mrf.mxu0
    %v410 = vadd.f32 0.0, %v409
    %411 = vmatmul.f32.gmra.mxu0 %v281
    %v412 = vpop.f32.mrf.mxu0
    %v413 = vadd.f32 0.0, %v412
    %414 = vmatmul.f32.gmra.mxu0 %v285
    %v415 = vpop.f32.mrf.mxu0
    %v416 = vadd.f32 0.0, %v415
    %417 = vdwg.mxu0
    %418 = vmatpush.msra.mxu0 %v320
    %419 = vmatpush.msra.mxu0 %v319
    %420 = vmatpush.msra.mxu0 %v318
    %421 = vmatpush.msra.mxu0 %v317
    %422 = vmatpush.msra.mxu0 %v316
    %423 = vmatpush.msra.mxu0 %v315
    %424 = vmatpush.msra.mxu0 %v314
    %425 = vmatpush.msra.mxu0 %v313
    %426 = vmatpush.msra.mxu0 %v312
    %427 = vmatpush.msra.mxu0 %v311
    %428 = vmatpush.msra.mxu0 %v310
    %429 = vmatpush.msra.mxu0 %v309
    %430 = vmatpush.msra.mxu0 %v308
    %431 = vmatpush.msra.mxu0 %v307
    %432 = vmatpush.msra.mxu0 %v306
    %433 = vmatpush.msra.mxu0 %v305
    %434 = vmatmul.f32.gmra.mxu0 %v226
    %v435 = vpop.f32.mrf.mxu0
    %v436 = vadd.f32 %v371, %v435
    %437 = vmatmul.f32.gmra.mxu0 %v230
    %v438 = vpop.f32.mrf.mxu0
    %v439 = vadd.f32 %v374, %v438
    %440 = vmatmul.f32.gmra.mxu0 %v234
    %v441 = vpop.f32.mrf.mxu0
    %v442 = vadd.f32 %v377, %v441
    %443 = vmatmul.f32.gmra.mxu0 %v238
    %v444 = vpop.f32.mrf.mxu0
    %v445 = vadd.f32 %v380, %v444
    %446 = vmatmul.f32.gmra.mxu0 %v242
    %v447 = vpop.f32.mrf.mxu0
    %v448 = vadd.f32 %v383, %v447
    %449 = vmatmul.f32.gmra.mxu0 %v246
    %v450 = vpop.f32.mrf.mxu0
    %v451 = vadd.f32 %v386, %v450
    %452 = vmatmul.f32.gmra.mxu0 %v250
    %v453 = vpop.f32.mrf.mxu0
    %v454 = vadd.f32 %v389, %v453
    %455 = vmatmul.f32.gmra.mxu0 %v254
    %v456 = vpop.f32.mrf.mxu0
    %v457 = vadd.f32 %v392, %v456
    %458 = vmatmul.f32.gmra.mxu0 %v258
    %v459 = vpop.f32.mrf.mxu0
    %v460 = vadd.f32 %v395, %v459
    %461 = vmatmul.f32.gmra.mxu0 %v262
    %v462 = vpop.f32.mrf.mxu0
    %v463 = vadd.f32 %v398, %v462
    %464 = vmatmul.f32.gmra.mxu0 %v266
    %v465 = vpop.f32.mrf.mxu0
    %v466 = vadd.f32 %v401, %v465
    %467 = vmatmul.f32.gmra.mxu0 %v270
    %v468 = vpop.f32.mrf.mxu0
    %v469 = vadd.f32 %v404, %v468
    %470 = vmatmul.f32.gmra.mxu0 %v274
    %v471 = vpop.f32.mrf.mxu0
    %v472 = vadd.f32 %v407, %v471
    %473 = vmatmul.f32.gmra.mxu0 %v278
    %v474 = vpop.f32.mrf.mxu0
    %v475 = vadd.f32 %v410, %v474
    %476 = vmatmul.f32.gmra.mxu0 %v282
    %v477 = vpop.f32.mrf.mxu0
    %v478 = vadd.f32 %v413, %v477
    %479 = vmatmul.f32.gmra.mxu0 %v286
    %v480 = vpop.f32.mrf.mxu0
    %v481 = vadd.f32 %v416, %v480
    %482 = vdwg.mxu0
    %483 = vmatpush.msra.mxu0 %v336
    %484 = vmatpush.msra.mxu0 %v335
    %485 = vmatpush.msra.mxu0 %v334
    %486 = vmatpush.msra.mxu0 %v333
    %487 = vmatpush.msra.mxu0 %v332
    %488 = vmatpush.msra.mxu0 %v331
    %489 = vmatpush.msra.mxu0 %v330
    %490 = vmatpush.msra.mxu0 %v329
    %491 = vmatpush.msra.mxu0 %v328
    %492 = vmatpush.msra.mxu0 %v327
    %493 = vmatpush.msra.mxu0 %v326
    %494 = vmatpush.msra.mxu0 %v325
    %495 = vmatpush.msra.mxu0 %v324
    %496 = vmatpush.msra.mxu0 %v323
    %497 = vmatpush.msra.mxu0 %v322
    %498 = vmatpush.msra.mxu0 %v321
    %499 = vmatmul.f32.gmra.mxu0 %v227
    %v500 = vpop.f32.mrf.mxu0
    %v501 = vadd.f32 %v436, %v500
    %502 = vmatmul.f32.gmra.mxu0 %v231
    %v503 = vpop.f32.mrf.mxu0
    %v504 = vadd.f32 %v439, %v503
    %505 = vmatmul.f32.gmra.mxu0 %v235
    %v506 = vpop.f32.mrf.mxu0
    %v507 = vadd.f32 %v442, %v506
    %508 = vmatmul.f32.gmra.mxu0 %v239
    %v509 = vpop.f32.mrf.mxu0
    %v510 = vadd.f32 %v445, %v509
    %511 = vmatmul.f32.gmra.mxu0 %v243
    %v512 = vpop.f32.mrf.mxu0
    %v513 = vadd.f32 %v448, %v512
    %514 = vmatmul.f32.gmra.mxu0 %v247
    %v515 = vpop.f32.mrf.mxu0
    %v516 = vadd.f32 %v451, %v515
    %517 = vmatmul.f32.gmra.mxu0 %v251
    %v518 = vpop.f32.mrf.mxu0
    %v519 = vadd.f32 %v454, %v518
    %520 = vmatmul.f32.gmra.mxu0 %v255
    %v521 = vpop.f32.mrf.mxu0
    %v522 = vadd.f32 %v457, %v521
    %523 = vmatmul.f32.gmra.mxu0 %v259
    %v524 = vpop.f32.mrf.mxu0
    %v525 = vadd.f32 %v460, %v524
    %526 = vmatmul.f32.gmra.mxu0 %v263
    %v527 = vpop.f32.mrf.mxu0
    %v528 = vadd.f32 %v463, %v527
    %529 = vmatmul.f32.gmra.mxu0 %v267
    %v530 = vpop.f32.mrf.mxu0
    %v531 = vadd.f32 %v466, %v530
    %532 = vmatmul.f32.gmra.mxu0 %v271
    %v533 = vpop.f32.mrf.mxu0
    %v534 = vadd.f32 %v469, %v533
    %535 = vmatmul.f32.gmra.mxu0 %v275
    %v536 = vpop.f32.mrf.mxu0
    %v537 = vadd.f32 %v472, %v536
    %538 = vmatmul.f32.gmra.mxu0 %v279
    %v539 = vpop.f32.mrf.mxu0
    %v540 = vadd.f32 %v475, %v539
    %541 = vmatmul.f32.gmra.mxu0 %v283
    %v542 = vpop.f32.mrf.mxu0
    %v543 = vadd.f32 %v478, %v542
    %544 = vmatmul.f32.gmra.mxu0 %v287
    %v545 = vpop.f32.mrf.mxu0
    %v546 = vadd.f32 %v481, %v545
    %547 = vdwg.mxu0
    %548 = vmatpush.msra.mxu0 %v352
    %549 = vmatpush.msra.mxu0 %v351
    %550 = vmatpush.msra.mxu0 %v350
    %551 = vmatpush.msra.mxu0 %v349
    %552 = vmatpush.msra.mxu0 %v348
    %553 = vmatpush.msra.mxu0 %v347
    %554 = vmatpush.msra.mxu0 %v346
    %555 = vmatpush.msra.mxu0 %v345
    %556 = vmatpush.msra.mxu0 %v344
    %557 = vmatpush.msra.mxu0 %v343
    %558 = vmatpush.msra.mxu0 %v342
    %559 = vmatpush.msra.mxu0 %v341
    %560 = vmatpush.msra.mxu0 %v340
    %561 = vmatpush.msra.mxu0 %v339
    %562 = vmatpush.msra.mxu0 %v338
    %563 = vmatpush.msra.mxu0 %v337
    %564 = vmatmul.f32.gmra.mxu0 %v228
    %v565 = vpop.f32.mrf.mxu0
    %v566 = vadd.f32 %v501, %v565
    %567 = vmatmul.f32.gmra.mxu0 %v232
    %v568 = vpop.f32.mrf.mxu0
    %v569 = vadd.f32 %v504, %v568
    %570 = vmatmul.f32.gmra.mxu0 %v236
    %v571 = vpop.f32.mrf.mxu0
    %v572 = vadd.f32 %v507, %v571
    %573 = vmatmul.f32.gmra.mxu0 %v240
    %v574 = vpop.f32.mrf.mxu0
    %v575 = vadd.f32 %v510, %v574
    %576 = vmatmul.f32.gmra.mxu0 %v244
    %v577 = vpop.f32.mrf.mxu0
    %v578 = vadd.f32 %v513, %v577
    %579 = vmatmul.f32.gmra.mxu0 %v248
    %v580 = vpop.f32.mrf.mxu0
    %v581 = vadd.f32 %v516, %v580
    %582 = vmatmul.f32.gmra.mxu0 %v252
    %v583 = vpop.f32.mrf.mxu0
    %v584 = vadd.f32 %v519, %v583
    %585 = vmatmul.f32.gmra.mxu0 %v256
    %v586 = vpop.f32.mrf.mxu0
    %v587 = vadd.f32 %v522, %v586
    %588 = vmatmul.f32.gmra.mxu0 %v260
    %v589 = vpop.f32.mrf.mxu0
    %v590 = vadd.f32 %v525, %v589
    %591 = vmatmul.f32.gmra.mxu0 %v264
    %v592 = vpop.f32.mrf.mxu0
    %v593 = vadd.f32 %v528, %v592
    %594 = vmatmul.f32.gmra.mxu0 %v268
    %v595 = vpop.f32.mrf.mxu0
    %v596 = vadd.f32 %v531, %v595
    %597 = vmatmul.f32.gmra.mxu0 %v272
    %v598 = vpop.f32.mrf.mxu0
    %v599 = vadd.f32 %v534, %v598
    %600 = vmatmul.f32.gmra.mxu0 %v276
    %v601 = vpop.f32.mrf.mxu0
    %v602 = vadd.f32 %v537, %v601
    %603 = vmatmul.f32.gmra.mxu0 %v280
    %v604 = vpop.f32.mrf.mxu0
    %v605 = vadd.f32 %v540, %v604
    %606 = vmatmul.f32.gmra.mxu0 %v284
    %v607 = vpop.f32.mrf.mxu0
    %v608 = vadd.f32 %v543, %v607
    %609 = vmatmul.f32.gmra.mxu0 %v288
    %v610 = vpop.f32.mrf.mxu0
    %v611 = vadd.f32 %v546, %v610
    %612 = vdwg.mxu0
    %v613 = vmul.f32 %v566, 11.313708
    %v614 = vmul.f32 %v569, 11.313708
    %v615 = vmul.f32 %v572, 11.313708
    %v616 = vmul.f32 %v575, 11.313708
    %v617 = vmul.f32 %v578, 11.313708
    %v618 = vmul.f32 %v581, 11.313708
    %v619 = vmul.f32 %v584, 11.313708
    %v620 = vmul.f32 %v587, 11.313708
    %v621 = vmul.f32 %v590, 11.313708
    %v622 = vmul.f32 %v593, 11.313708
    %v623 = vmul.f32 %v596, 11.313708
    %v624 = vmul.f32 %v599, 11.313708
    %v625 = vmul.f32 %v602, 11.313708
    %v626 = vmul.f32 %v605, 11.313708
    %v627 = vmul.f32 %v608, 11.313708
    %v628 = vmul.f32 %v611, 11.313708
    %629 = vst [vmem:[#allocation5] sm:$0xff] %v613
    %630 = vst [vmem:[#allocation5 + $0x8] sm:$0xff] %v614
    %631 = vst [vmem:[#allocation5 + $0x10] sm:$0xff] %v615
    %632 = vst [vmem:[#allocation5 + $0x18] sm:$0xff] %v616
    %633 = vst [vmem:[#allocation5 + $0x20] sm:$0xff] %v617
    %634 = vst [vmem:[#allocation5 + $0x28] sm:$0xff] %v618
    %635 = vst [vmem:[#allocation5 + $0x30] sm:$0xff] %v619
    %636 = vst [vmem:[#allocation5 + $0x38] sm:$0xff] %v620
    %637 = vst [vmem:[#allocation5 + $0x40] sm:$0xff] %v621
    %638 = vst [vmem:[#allocation5 + $0x48] sm:$0xff] %v622
    %639 = vst [vmem:[#allocation5 + $0x50] sm:$0xff] %v623
    %640 = vst [vmem:[#allocation5 + $0x58] sm:$0xff] %v624
    %641 = vst [vmem:[#allocation5 + $0x60] sm:$0xff] %v625
    %642 = vst [vmem:[#allocation5 + $0x68] sm:$0xff] %v626
    %643 = vst [vmem:[#allocation5 + $0x70] sm:$0xff] %v627
    %644 = vst [vmem:[#allocation5 + $0x78] sm:$0xff] %v628
    // Predicated region
    $region14: #{tpu_custom_call.1} parent=1 // pred_check
      _
    $region15: #{tpu_custom_call.1} parent=1 // pred_check_branch
      %646 = sbr.rel (0) target = $region17
    $region16: #{tpu_custom_call.1} parent=1 // pred_region
      %648 = vsyncadd [#allocation4], 0
      %s649 = sshll.u32 [#allocation5], 4
      %s650 = int_to_ptr.vmem [resolvable:$true] %s649
      %s651 = sshll.u32 %s2, 4
      %s652 = int_to_ptr.hbm [resolvable:$true] %s651
      %657 = dma.vmem_to_hbm [thread:$0]  %s650, 2048, %s652, [#allocation4], 128, 128, 8
    $region17: #{tpu_custom_call.1} parent=1 // pred_fallthru
      _
    // Predicated region
    $region18: #{tpu_custom_call.1} parent=1 // pred_check
      _
    $region19: #{tpu_custom_call.1} parent=1 // pred_check_branch
      %659 = sbr.rel (0) target = $region21
    $region20: #{tpu_custom_call.1} parent=1 // pred_region
      %661 = dma.done [#allocation4], 2048
    $region21: #{tpu_custom_call.1} parent=1 // pred_fallthru
      _
    %662 = vsyncpa [#allocation3], 1
    %663 = vsyncpa [#allocation4], 1

</llo_original>
